<compile_context>
chip_gen: v7x
topology: tpu7x:2x2x1
jax: 0.10.0
libtpu: 0.0.40
codegen_flags: <defaults>
</compile_context>

<pallas_src>
import jax
import jax.numpy as jnp
from jax.experimental import pallas as pl
from jax.experimental.pallas import tpu as pltpu


# ----------------------------- kernel ---------------------------------------

def model_kernel(x_ref, w1_ref, b1_ref, w2_ref, b2_ref, w3_ref, b3_ref, out_ref):
    x = x_ref[...]                                                    # (TB, Din) bf16

    # layer 1 (fused dynamics + reward, single matmul):  h = relu(x @ W1 + b1)
    h = jnp.dot(x, w1_ref[...], preferred_element_type=jnp.float32) + b1_ref[...]
    h = jnp.maximum(h, 0.0).astype(jnp.bfloat16)

    # layer 2 (block-diagonal (2H, 2H): halves stay independent)
    # NOTE: on v5e's 128x128 MXU this fused 256-wide matmul wastes 2 of 4 MXU
    # tiles on zero blocks; a v5e-specific path should split it into two
    # (TB,128)@(128,128) dots. Kept fused here (optimal on v6e/v7x 256x256 MXU).
    h = jnp.dot(h, w2_ref[...], preferred_element_type=jnp.float32) + b2_ref[...]
    h = jnp.maximum(h, 0.0).astype(jnp.bfloat16)

    # layer 3 (block-diagonal, lane-padded) with the residual folded in:
    #   h_aug = [h | x];  W3 rows [2H:2H+S, :S] = I_S  ->  cols [0:S] = dx + s,
    #   col S = reward, remaining lanes = 0.
    h_aug = jnp.concatenate([h, x], axis=-1)                          # (TB, 2H+Din)
    out_ref[...] = (jnp.dot(h_aug, w3_ref[...],
                            preferred_element_type=jnp.float32) + b3_ref[...])


# ----------------------------- tiling ----------------------------------------

def _choose_tiling(batch, max_tile=2048, align=16):
    """Return (tile, num_tiles, padded_batch).

    Tile is a multiple of `align` (16: bf16 sublane packing); the batch is
    padded up to tile*num_tiles, and we use >= 2 grid steps whenever the
    aligned batch allows it so the 'parallel' axis can feed both v7x TCs.
    """
    ceil = lambda p, q: -(-p // q)
    b_al = ceil(batch, align) * align
    min_tiles = 2 if b_al >= 2 * align else 1
    n_tiles = max(min_tiles, ceil(b_al, max_tile))
    tb = ceil(ceil(b_al, n_tiles), align) * align
    n_tiles = ceil(b_al, tb)
    return tb, n_tiles, tb * n_tiles


# ----------------------------- wrapper ---------------------------------------

def model_forward(s, a, packed, log_std, *, log_std_min=-10.0, log_std_max=2.0,
                  max_tile_b=2048):
    """Returns (x + s, std, rew, done) matching the PyTorch forward (stoch=False)."""
    B, S = s.shape
    A = a.shape[1]
    Din = S + A
    OUT = packed["w3"].shape[1]                 # lane-dense padded output width (128)

    TB, n_tiles, B_pad = _choose_tiling(B, max_tile_b)

    # one tiny wrapper-side concat/cast of the (B, S+A) input; kernel does the rest.
    x = jnp.concatenate([s, a], axis=1).astype(jnp.bfloat16)
    if B_pad != B:
        x = jnp.pad(x, ((0, B_pad - B), (0, 0)))

    row_map = lambda i: (i, 0)
    fixed = lambda i: (0, 0)

    out = pl.pallas_call(
        model_kernel,
        out_shape=jax.ShapeDtypeStruct((B_pad, OUT), jnp.float32),
        grid=(n_tiles,),
        in_specs=[
            pl.BlockSpec((TB, Din), row_map),            # x = [s|a]     (bf16)
            pl.BlockSpec(packed["w1"].shape, fixed),     # (Din, 2H)     (bf16)
            pl.BlockSpec(packed["b1"].shape, fixed),     # (1, 2H)       (f32)
            pl.BlockSpec(packed["w2"].shape, fixed),     # (2H, 2H)      (bf16)
            pl.BlockSpec(packed["b2"].shape, fixed),     # (1, 2H)       (f32)
            pl.BlockSpec(packed["w3"].shape, fixed),     # (2H+Din, OUT) (bf16)
            pl.BlockSpec(packed["b3"].shape, fixed),     # (1, OUT)      (f32)
        ],
        out_specs=pl.BlockSpec((TB, OUT), row_map),
        compiler_params=pltpu.CompilerParams(
            dimension_semantics=("parallel",)),          # shard batch tiles on v7x
    )(x, packed["w1"], packed["b1"], packed["w2"], packed["b2"],
      packed["w3"], packed["b3"])

    x_out = out[:B, :S]                                  # residual already folded in
    rew = out[:B, S:S + 1]
    # std is batch-independent; computed once here (expand_as semantics).
    std = jnp.broadcast_to(
        jnp.exp(jnp.clip(log_std, log_std_min, log_std_max)), (B, S))
    done = jnp.zeros((0,), jnp.float32)                  # torch.zeros(0)
    return x_out, std, rew, done


# ----------------------------- parameter packing -----------------------------

def pack_params(p, num_states, num_actions, hidden, out_pad=128):
    """Fuse per-layer PyTorch-style params into the kernel's packed bf16 layout."""
    S, A, H = num_states, num_actions, hidden
    Din = S + A
    assert out_pad >= S + 1

    # layer 1: shared input, heads side by side
    w1 = jnp.concatenate([p["w1"], p["wr1"]], axis=1)            # (Din, 2H)
    b1 = jnp.concatenate([p["b1"], p["br1"]], axis=1)            # (1, 2H)

    # layer 2: block-diagonal keeps dyn / reward halves independent
    w2 = jnp.zeros((2 * H, 2 * H), jnp.float32)
    w2 = w2.at[:H, :H].set(p["w2"]).at[H:, H:].set(p["wr2"])
    b2 = jnp.concatenate([p["b2"], p["br2"]], axis=1)            # (1, 2H)

    # layer 3: block-diagonal + identity block (residual) + lane padding
    #   rows [0:H, :S]        = dynamics head
    #   rows [H:2H, S:S+1]    = reward head
    #   rows [2H:2H+S, :S]    = I_S  (adds s -> folds the "+ s" residual)
    #   rows [2H+S:2H+Din]    = 0    (action part of x unused here)
    w3 = jnp.zeros((2 * H + Din, out_pad), jnp.float32)
    w3 = w3.at[:H, :S].set(p["w3"])
    w3 = w3.at[H:2 * H, S:S + 1].set(p["wr3"])
    w3 = w3.at[2 * H:2 * H + S, :S].set(jnp.eye(S, dtype=jnp.float32))
    b3 = jnp.zeros((1, out_pad), jnp.float32)
    b3 = b3.at[:, :S].set(p["b3"]).at[:, S:S + 1].set(p["br3"])

    bf16 = jnp.bfloat16
    return dict(w1=w1.astype(bf16), b1=b1,
                w2=w2.astype(bf16), b2=b2,
                w3=w3.astype(bf16), b3=b3)


def init_params(key, num_states, num_actions, hidden=128, init_w=0.003, std=1e-6):
    """Deterministic parameter init mirroring the PyTorch module's __init__."""
    d_in = num_states + num_actions
    ks = jax.random.split(key, 16)

    def lin(kw, kb, fan_in, fan_out):
        lim = 1.0 / jnp.sqrt(jnp.float32(fan_in))                # PyTorch default init
        w = jax.random.uniform(kw, (fan_in, fan_out), jnp.float32, -lim, lim)
        b = jax.random.uniform(kb, (1, fan_out), jnp.float32, -lim, lim)
        return w, b

    def lin_last(kw, kb, fan_in, fan_out):
        w = jax.random.uniform(kw, (fan_in, fan_out), jnp.float32, -init_w, init_w)
        b = jax.random.uniform(kb, (1, fan_out), jnp.float32, -init_w, init_w)
        return w, b

    p = {}
    p["w1"], p["b1"] = lin(ks[0], ks[1], d_in, hidden)
    p["w2"], p["b2"] = lin(ks[2], ks[3], hidden, hidden)
    p["w3"], p["b3"] = lin_last(ks[4], ks[5], hidden, num_states)
    p["wr1"], p["br1"] = lin(ks[6], ks[7], d_in, hidden)
    p["wr2"], p["br2"] = lin(ks[8], ks[9], hidden, hidden)
    p["wr3"], p["br3"] = lin_last(ks[10], ks[11], hidden, 1)
    # log_std = randn(1, num_states) * 1e-6 (non-stochastic branch)
    p["log_std"] = jax.random.normal(ks[12], (1, num_states), jnp.float32) * std
    return p


# ----------------------------- demo -------------------------------------------

if __name__ == "__main__":
    num_states, num_actions, batch, hidden = 8, 4, 8, 128

    key = jax.random.PRNGKey(0)
    kp, ks_, ka = jax.random.split(key, 3)
    raw = init_params(kp, num_states, num_actions, hidden=hidden)
    packed = pack_params(raw, num_states, num_actions, hidden)

    s = jax.random.normal(ks_, (batch, num_states), jnp.float32)
    a = jax.random.normal(ka, (batch, num_actions), jnp.float32)

    x_out, std, rew, done = model_forward(s, a, packed, raw["log_std"])
    jax.block_until_ready((x_out, std, rew))

    # reference check (plain JAX, unfused, f32; kernel runs bf16 matmuls with
    # f32 accumulation, so tolerance is loosened accordingly)
    x_in = jnp.concatenate([s, a], axis=1)
    h = jnp.maximum(x_in @ raw["w1"] + raw["b1"], 0.0)
    h = jnp.maximum(h @ raw["w2"] + raw["b2"], 0.0)
    x_ref = h @ raw["w3"] + raw["b3"] + s
    r = jnp.maximum(x_in @ raw["wr1"] + raw["br1"], 0.0)
    r = jnp.maximum(r @ raw["wr2"] + raw["br2"], 0.0)
    rew_ref = r @ raw["wr3"] + raw["br3"]
    std_ref = jnp.broadcast_to(
        jnp.exp(jnp.clip(raw["log_std"], -10.0, 2.0)), (batch, num_states))

    assert x_out.shape == (batch, num_states)
    assert std.shape == (batch, num_states)
    assert rew.shape == (batch, 1)
    assert done.shape == (0,)
    assert jnp.allclose(x_out, x_ref, atol=5e-2, rtol=5e-2)
    assert jnp.allclose(rew, rew_ref, atol=5e-2, rtol=5e-2)
    assert jnp.allclose(std, std_ref, atol=1e-6, rtol=1e-6)
    print("KERNEL_OK")
</pallas_src>

<mosaic_0001>
module attributes {stable_mosaic.version = 11 : i64} {
  func.func @model_kernel(%arg0: i32, %arg1: memref<16x12xbf16, #tpu.memory_space<vmem>>, %arg2: memref<12x256xbf16, #tpu.memory_space<vmem>>, %arg3: memref<1x256xf32, #tpu.memory_space<vmem>>, %arg4: memref<256x256xbf16, #tpu.memory_space<vmem>>, %arg5: memref<1x256xf32, #tpu.memory_space<vmem>>, %arg6: memref<268x128xbf16, #tpu.memory_space<vmem>>, %arg7: memref<1x128xf32, #tpu.memory_space<vmem>>, %arg8: memref<16x128xf32, #tpu.memory_space<vmem>>) attributes {dimension_semantics = [#tpu.dimension_semantics<parallel>], iteration_bounds = array<i64: 1>, scalar_prefetch = 0 : i64, scratch_operands = 0 : i64, tpu.core_type = #tpu.core_type<tc>, window_params = [{transform_indices = @transform_0, window_bounds = array<i64: 16, 12>}, {pipeline_mode = #tpu.pipeline_mode<synchronous>, transform_indices = @transform_1, window_bounds = array<i64: 12, 256>}, {pipeline_mode = #tpu.pipeline_mode<synchronous>, transform_indices = @transform_2, window_bounds = array<i64: 1, 256>}, {pipeline_mode = #tpu.pipeline_mode<synchronous>, transform_indices = @transform_3, window_bounds = array<i64: 256, 256>}, {pipeline_mode = #tpu.pipeline_mode<synchronous>, transform_indices = @transform_4, window_bounds = array<i64: 1, 256>}, {pipeline_mode = #tpu.pipeline_mode<synchronous>, transform_indices = @transform_5, window_bounds = array<i64: 268, 128>}, {pipeline_mode = #tpu.pipeline_mode<synchronous>, transform_indices = @transform_6, window_bounds = array<i64: 1, 128>}, {transform_indices = @transform_7, window_bounds = array<i64: 16, 128>}]} {
    %c0 = arith.constant 0 : index
    %c0_0 = arith.constant 0 : index
    %0 = vector.load %arg1[%c0, %c0_0] : memref<16x12xbf16, #tpu.memory_space<vmem>>, vector<16x12xbf16>
    %c0_1 = arith.constant 0 : index
    %c0_2 = arith.constant 0 : index
    %1 = vector.load %arg2[%c0_1, %c0_2] : memref<12x256xbf16, #tpu.memory_space<vmem>>, vector<12x256xbf16>
    %cst = arith.constant dense<0.000000e+00> : vector<16x256xf32>
    %2 = tpu.matmul %0, %1, %cst {dimension_numbers = #tpu.dot_dimension_numbers<[1], [0], [0], [1], [0, 0, 1, 1], [], []>} : vector<16x12xbf16>, vector<12x256xbf16>, vector<16x256xf32> -> vector<16x256xf32>
    %c0_3 = arith.constant 0 : index
    %c0_4 = arith.constant 0 : index
    %3 = vector.load %arg3[%c0_3, %c0_4] : memref<1x256xf32, #tpu.memory_space<vmem>>, vector<1x256xf32>
    %4 = vector.broadcast %3 : vector<1x256xf32> to vector<16x256xf32>
    %5 = arith.addf %2, %4 : vector<16x256xf32>
    %cst_5 = arith.constant 0.000000e+00 : f32
    %6 = vector.broadcast %cst_5 : f32 to vector<16x256xf32>
    %7 = arith.maximumf %5, %6 : vector<16x256xf32>
    %8 = arith.truncf %7 : vector<16x256xf32> to vector<16x256xbf16>
    %c0_6 = arith.constant 0 : index
    %c0_7 = arith.constant 0 : index
    %9 = vector.load %arg4[%c0_6, %c0_7] : memref<256x256xbf16, #tpu.memory_space<vmem>>, vector<256x256xbf16>
    %cst_8 = arith.constant dense<0.000000e+00> : vector<16x256xf32>
    %10 = tpu.matmul %8, %9, %cst_8 {dimension_numbers = #tpu.dot_dimension_numbers<[1], [0], [0], [1], [0, 0, 1, 1], [], []>} : vector<16x256xbf16>, vector<256x256xbf16>, vector<16x256xf32> -> vector<16x256xf32>
    %c0_9 = arith.constant 0 : index
    %c0_10 = arith.constant 0 : index
    %11 = vector.load %arg5[%c0_9, %c0_10] : memref<1x256xf32, #tpu.memory_space<vmem>>, vector<1x256xf32>
    %12 = vector.broadcast %11 : vector<1x256xf32> to vector<16x256xf32>
    %13 = arith.addf %10, %12 : vector<16x256xf32>
    %cst_11 = arith.constant 0.000000e+00 : f32
    %14 = vector.broadcast %cst_11 : f32 to vector<16x256xf32>
    %15 = arith.maximumf %13, %14 : vector<16x256xf32>
    %16 = arith.truncf %15 : vector<16x256xf32> to vector<16x256xbf16>
    %17 = tpu.concatenate %16, %0 in 1 : vector<16x256xbf16>, vector<16x12xbf16> -> vector<16x268xbf16>
    %c0_12 = arith.constant 0 : index
    %c0_13 = arith.constant 0 : index
    %18 = vector.load %arg6[%c0_12, %c0_13] : memref<268x128xbf16, #tpu.memory_space<vmem>>, vector<268x128xbf16>
    %cst_14 = arith.constant dense<0.000000e+00> : vector<16x128xf32>
    %19 = tpu.matmul %17, %18, %cst_14 {dimension_numbers = #tpu.dot_dimension_numbers<[1], [0], [0], [1], [0, 0, 1, 1], [], []>} : vector<16x268xbf16>, vector<268x128xbf16>, vector<16x128xf32> -> vector<16x128xf32>
    %c0_15 = arith.constant 0 : index
    %c0_16 = arith.constant 0 : index
    %20 = vector.load %arg7[%c0_15, %c0_16] : memref<1x128xf32, #tpu.memory_space<vmem>>, vector<1x128xf32>
    %21 = vector.broadcast %20 : vector<1x128xf32> to vector<16x128xf32>
    %22 = arith.addf %19, %21 : vector<16x128xf32>
    %c0_17 = arith.constant 0 : index
    %c0_18 = arith.constant 0 : index
    %23 = vector.load %arg8[%c0_17, %c0_18] : memref<16x128xf32, #tpu.memory_space<vmem>>, vector<16x128xf32>
    tpu.vector_store %arg8[%c0_17, %c0_18], %22 {strides = array<i32>} : memref<16x128xf32, #tpu.memory_space<vmem>>, vector<16x128xf32>,
    return
  }
  func.func @transform_0(%arg0: i32) -> (i32, i32) {
    %c0_i32 = arith.constant 0 : i32
    %c0_i32_0 = arith.constant 0 : i32
    return %arg0, %c0_i32 : i32, i32
  }
  func.func @transform_1(%arg0: i32) -> (i32, i32) {
    %c0_i32 = arith.constant 0 : i32
    %c0_i32_0 = arith.constant 0 : i32
    %c0_i32_1 = arith.constant 0 : i32
    return %c0_i32, %c0_i32_0 : i32, i32
  }
  func.func @transform_2(%arg0: i32) -> (i32, i32) {
    %c0_i32 = arith.constant 0 : i32
    %c0_i32_0 = arith.constant 0 : i32
    %c0_i32_1 = arith.constant 0 : i32
    return %c0_i32, %c0_i32_0 : i32, i32
  }
  func.func @transform_3(%arg0: i32) -> (i32, i32) {
    %c0_i32 = arith.constant 0 : i32
    %c0_i32_0 = arith.constant 0 : i32
    %c0_i32_1 = arith.constant 0 : i32
    return %c0_i32, %c0_i32_0 : i32, i32
  }
  func.func @transform_4(%arg0: i32) -> (i32, i32) {
    %c0_i32 = arith.constant 0 : i32
    %c0_i32_0 = arith.constant 0 : i32
    %c0_i32_1 = arith.constant 0 : i32
    return %c0_i32, %c0_i32_0 : i32, i32
  }
  func.func @transform_5(%arg0: i32) -> (i32, i32) {
    %c0_i32 = arith.constant 0 : i32
    %c0_i32_0 = arith.constant 0 : i32
    %c0_i32_1 = arith.constant 0 : i32
    return %c0_i32, %c0_i32_0 : i32, i32
  }
  func.func @transform_6(%arg0: i32) -> (i32, i32) {
    %c0_i32 = arith.constant 0 : i32
    %c0_i32_0 = arith.constant 0 : i32
    %c0_i32_1 = arith.constant 0 : i32
    return %c0_i32, %c0_i32_0 : i32, i32
  }
  func.func @transform_7(%arg0: i32) -> (i32, i32) {
    %c0_i32 = arith.constant 0 : i32
    %c0_i32_0 = arith.constant 0 : i32
    return %arg0, %c0_i32 : i32, i32
  }
}

</mosaic_0001>

<llo_original>
// kernel: tpu_custom_call.1
$region0: #{tpu_custom_call.1}
  #allocation0 [shape = 'u32[]', space=smem, size = 0x4, offset = 0x4, fixed_abs, tag = 'smem constant byte address 0x4 - core index']
  #allocation1 [shape = 'u32[144,128]{1,0:T(1,128)}', space=vmem, size = 0x12000, scoped, tag = 'internal scratch']
  %s0 = inlined_call_operand.hbm [shape: bf16[16,12], index: 0, kind: input, shape index: {}]
  %s1 = inlined_call_operand.hbm [shape: bf16[12,256], index: 1, kind: input, shape index: {}]
  %s2 = inlined_call_operand.vmem [shape: f32[1,256], index: 2, kind: input, shape index: {}]
  %s3 = inlined_call_operand.hbm [shape: bf16[256,256], index: 3, kind: input, shape index: {}]
  %s4 = inlined_call_operand.vmem [shape: f32[1,256], index: 4, kind: input, shape index: {}]
  %s5 = inlined_call_operand.hbm [shape: bf16[268,128], index: 5, kind: input, shape index: {}]
  %s6 = inlined_call_operand.vmem [shape: f32[1,128], index: 6, kind: input, shape index: {}]
  %s7 = inlined_call_operand.hbm [shape: f32[16,128], index: 7, kind: output, shape index: {}]
  %s8 = sld [smem:[#allocation0]]
  $region54: #{tpu_custom_call.1} parent=0
    _
  %s10 = ssub.s32 1, %s8
  %s11 = scalar_select 0, %s10, %s8
  $region1: #{tpu_custom_call.1} parent=0
    #allocation2 [shape = 'u8[4096]{0}', space=vmem, size = 0x1000, scoped, tag = 'input window, operand 0, single buffered']
    #allocation3 [shape = 's32[1]{0}', space=sflag, size = 0x4, scoped, tag = 'scoped memory for tpu_custom_call.1']
    #allocation4 [shape = 's32[1]{0}', space=sflag, size = 0x4, scoped, tag = 'scoped memory for tpu_custom_call.1']
    #allocation5 [shape = 'u8[8192]{0}', space=vmem, size = 0x2000, scoped, tag = 'input window, operand 1, single buffered']
    #allocation6 [shape = 's32[1]{0}', space=sflag, size = 0x4, scoped, tag = 'scoped memory for tpu_custom_call.1']
    #allocation7 [shape = 'u8[131072]{0}', space=vmem, size = 0x20000, scoped, tag = 'input window, operand 3, single buffered']
    #allocation8 [shape = 'u8[69632]{0}', space=vmem, size = 0x11000, scoped, tag = 'input window, operand 5, single buffered']
    #allocation9 [shape = 's32[1]{0}', space=sflag, size = 0x4, scoped, tag = 'scoped memory for tpu_custom_call.1']
    #allocation10 [shape = 'u8[8192]{0}', space=vmem, size = 0x2000, scoped, tag = 'output window, operand 0, single buffered']
    %12 = vsyncpa [#allocation3], 0
    %13 = vsyncpa [#allocation6], 0
    %14 = vsyncpa [#allocation9], 0
    %15 = vsyncpa [#allocation4], 0
    // Predicated region
    $region2: #{tpu_custom_call.1} parent=1 // pred_check
      _
    $region3: #{tpu_custom_call.1} parent=1 // pred_check_branch
      %17 = sbr.rel (0) target = $region5
    $region4: #{tpu_custom_call.1} parent=1 // pred_region
      %s19 = ssub.s32 128, 128
      %20 = vsyncadd [#allocation3], %s19
      %s21 = sshll.u32 [#allocation2], 4
      %s22 = int_to_ptr.vmem [resolvable:$true] %s21
      %27 = dma.hbm_to_vmem [thread:$0]  %s0, 128, %s22, [#allocation3], 64, 64, 4
    $region5: #{tpu_custom_call.1} parent=1 // pred_fallthru
      _
    // Predicated region
    $region6: #{tpu_custom_call.1} parent=1 // pred_check
      _
    $region7: #{tpu_custom_call.1} parent=1 // pred_check_branch
      %29 = sbr.rel (0) target = $region9
    $region8: #{tpu_custom_call.1} parent=1 // pred_region
      %s31 = ssub.s32 256, 256
      %32 = vsyncadd [#allocation6], %s31
      %s33 = sshll.u32 [#allocation5], 4
      %s34 = int_to_ptr.vmem [resolvable:$true] %s33
      %39 = dma.hbm_to_vmem [thread:$0]  %s1, 256, %s34, [#allocation6], 128, 128, 8
    $region9: #{tpu_custom_call.1} parent=1 // pred_fallthru
      _
    // Predicated region
    $region10: #{tpu_custom_call.1} parent=1 // pred_check
      _
    $region11: #{tpu_custom_call.1} parent=1 // pred_check_branch
      %41 = sbr.rel (0) target = $region13
    $region12: #{tpu_custom_call.1} parent=1 // pred_region
      _
    $region13: #{tpu_custom_call.1} parent=1 // pred_fallthru
      _
    // Predicated region
    $region14: #{tpu_custom_call.1} parent=1 // pred_check
      _
    $region15: #{tpu_custom_call.1} parent=1 // pred_check_branch
      %43 = sbr.rel (0) target = $region17
    $region16: #{tpu_custom_call.1} parent=1 // pred_region
      %s45 = ssub.s32 4096, 4096
      %46 = vsyncadd [#allocation6], %s45
      %s47 = sshll.u32 [#allocation7], 4
      %s48 = int_to_ptr.vmem [resolvable:$true] %s47
      %53 = dma.hbm_to_vmem [thread:$0]  %s3, 4096, %s48, [#allocation6], 128, 128, 8
    $region17: #{tpu_custom_call.1} parent=1 // pred_fallthru
      _
    // Predicated region
    $region18: #{tpu_custom_call.1} parent=1 // pred_check
      _
    $region19: #{tpu_custom_call.1} parent=1 // pred_check_branch
      %55 = sbr.rel (0) target = $region21
    $region20: #{tpu_custom_call.1} parent=1 // pred_region
      _
    $region21: #{tpu_custom_call.1} parent=1 // pred_fallthru
      _
    // Predicated region
    $region22: #{tpu_custom_call.1} parent=1 // pred_check
      _
    $region23: #{tpu_custom_call.1} parent=1 // pred_check_branch
      %57 = sbr.rel (0) target = $region25
    $region24: #{tpu_custom_call.1} parent=1 // pred_region
      %s59 = ssub.s32 2176, 2176
      %60 = vsyncadd [#allocation9], %s59
      %s61 = sshll.u32 [#allocation8], 4
      %s62 = int_to_ptr.vmem [resolvable:$true] %s61
      %67 = dma.hbm_to_vmem [thread:$0]  %s5, 2176, %s62, [#allocation9], 64, 64, 4
    $region25: #{tpu_custom_call.1} parent=1 // pred_fallthru
      _
    // Predicated region
    $region26: #{tpu_custom_call.1} parent=1 // pred_check
      _
    $region27: #{tpu_custom_call.1} parent=1 // pred_check_branch
      %69 = sbr.rel (0) target = $region29
    $region28: #{tpu_custom_call.1} parent=1 // pred_region
      _
    $region29: #{tpu_custom_call.1} parent=1 // pred_fallthru
      _
    // Predicated region
    $region30: #{tpu_custom_call.1} parent=1 // pred_check
      _
    $region31: #{tpu_custom_call.1} parent=1 // pred_check_branch
      %71 = sbr.rel (0) target = $region33
    $region32: #{tpu_custom_call.1} parent=1 // pred_region
      %72 = dma.done [#allocation3], 128
    $region33: #{tpu_custom_call.1} parent=1 // pred_fallthru
      _
    // Predicated region
    $region34: #{tpu_custom_call.1} parent=1 // pred_check
      _
    $region35: #{tpu_custom_call.1} parent=1 // pred_check_branch
      %74 = sbr.rel (0) target = $region37
    $region36: #{tpu_custom_call.1} parent=1 // pred_region
      %75 = dma.done [#allocation6], 256
    $region37: #{tpu_custom_call.1} parent=1 // pred_fallthru
      _
    // Predicated region
    $region38: #{tpu_custom_call.1} parent=1 // pred_check
      _
    $region39: #{tpu_custom_call.1} parent=1 // pred_check_branch
      %77 = sbr.rel (0) target = $region41
    $region40: #{tpu_custom_call.1} parent=1 // pred_region
      %78 = dma.done [#allocation6], 4096
    $region41: #{tpu_custom_call.1} parent=1 // pred_fallthru
      _
    // Predicated region
    $region42: #{tpu_custom_call.1} parent=1 // pred_check
      _
    $region43: #{tpu_custom_call.1} parent=1 // pred_check_branch
      %80 = sbr.rel (0) target = $region45
    $region44: #{tpu_custom_call.1} parent=1 // pred_region
      %81 = dma.done [#allocation9], 2176
    $region45: #{tpu_custom_call.1} parent=1 // pred_fallthru
      _
    %v83 = vld [vmem:[#allocation2] sm:$0xf]
    %v84 = vld [vmem:[#allocation2 + $0x4] sm:$0xf]
    %v85 = vld [vmem:[#allocation5] sm:$0xff]
    %v86 = vld [vmem:[#allocation5 + $0x8] sm:$0x33]
    %v87 = vld [vmem:[%s2] sm:$0x3]
    %v89 = vlaneseq
    %v90 = vshrl.u32 %v89, 7
    %v91 = vsub.s32 0, %v90
    %v92 = vrot.slane %v87, %v91
    %v93 = vlaneseq
    %v94 = vshrl.u32 %v93, 7
    %v95 = vsub.s32 1, %v94
    %v96 = vrot.slane %v87, %v95
    %v101 = vunpack.c.l.b16 %v83
    %v102 = vunpack.c.l.b16 %v84
    %v103 = vpack.c.b16 %v102, %v101
    %v106 = vunpack.c.l.b16 %v85
    %v107 = vunpack.c.h.b16 %v85
    %v108 = vunpack.c.l.b16 %v86
    %v109 = vunpack.c.h.b16 %v86
    %v110 = vpack.c.b16 %v108, %v106
    %v111 = vpack.c.b16 %v109, %v107
    %vm112 = vcmask 97280
    %v114 = vsel %vm112, %v103, 0
    %vm116 = vcmask 1045504
    %v118 = vsel %vm116, %v110, 0
    %v121 = vsel %vm116, %v111, 0
    %123 = vmatprep.subr.bf16.mxu0 %v121
    %124 = vmatpush1.bf16.msra.mxu0 %v118
    %125 = vmatprep.subr.bf16.mxu0 0
    %126 = vmatpush1.bf16.msra.mxu0 0
    %127 = vmatprep.subr.bf16.mxu0 0
    %128 = vmatpush1.bf16.msra.mxu0 0
    %129 = vmatprep.subr.bf16.mxu0 0
    %130 = vmatpush1.bf16.msra.mxu0 0
    %131 = vmatprep.subr.bf16.mxu0 0
    %132 = vmatpush1.bf16.msra.mxu0 0
    %133 = vmatprep.subr.bf16.mxu0 0
    %134 = vmatpush1.bf16.msra.mxu0 0
    %135 = vmatprep.subr.bf16.mxu0 0
    %136 = vmatpush1.bf16.msra.mxu0 0
    %137 = vmatprep.subr.bf16.mxu0 0
    %138 = vmatpush1.bf16.msra.mxu0 0
    %139 = vmatprep.subr.bf16.mxu0 0
    %140 = vmatpush1.bf16.msra.mxu0 0
    %141 = vmatprep.subr.bf16.mxu0 0
    %142 = vmatpush1.bf16.msra.mxu0 0
    %143 = vmatprep.subr.bf16.mxu0 0
    %144 = vmatpush1.bf16.msra.mxu0 0
    %145 = vmatprep.subr.bf16.mxu0 0
    %146 = vmatpush1.bf16.msra.mxu0 0
    %147 = vmatprep.subr.bf16.mxu0 0
    %148 = vmatpush1.bf16.msra.mxu0 0
    %149 = vmatprep.subr.bf16.mxu0 0
    %150 = vmatpush1.bf16.msra.mxu0 0
    %151 = vmatprep.subr.bf16.mxu0 0
    %152 = vmatpush1.bf16.msra.mxu0 0
    %153 = vmatprep.subr.bf16.mxu0 0
    %154 = vmatpush1.bf16.msra.mxu0 0
    %155 = vmatprep.mubr.bf16.mxu0 0
    %156 = vmatmul.mubr.bf16.gmra.mrb[0].mxu0 %v114
    %v157 = vpop.f32.mrb[0].mxu0
    %v158 = vadd.f32 %v92, %v157
    %v159 = vpop.f32.mrb[0].mxu0
    %v160 = vadd.f32 %v96, %v159
    %v161 = vpop.f32.mrb[0].mxu0
    %v162 = vadd.f32 %v92, %v161
    %v163 = vpop.f32.mrb[0].mxu0
    %v164 = vadd.f32 %v96, %v163
    %165 = vdwg.mxu0
    %v166 = vmax.f32 %v158, 0.0
    %v167 = vmax.f32 %v160, 0.0
    %v168 = vmax.f32 %v162, 0.0
    %v169 = vmax.f32 %v164, 0.0
    %v170 = vpack.c.bf16 %v168, %v166
    %v171 = vpack.c.bf16 %v169, %v167
    %v172 = vld [vmem:[#allocation7] sm:$0xff]
    %v173 = vld [vmem:[#allocation7 + $0x8] sm:$0xff]
    %v174 = vld [vmem:[#allocation7 + $0x10] sm:$0xff]
    %v175 = vld [vmem:[#allocation7 + $0x18] sm:$0xff]
    %v176 = vld [vmem:[#allocation7 + $0x20] sm:$0xff]
    %v177 = vld [vmem:[#allocation7 + $0x28] sm:$0xff]
    %v178 = vld [vmem:[#allocation7 + $0x30] sm:$0xff]
    %v179 = vld [vmem:[#allocation7 + $0x38] sm:$0xff]
    %v180 = vld [vmem:[#allocation7 + $0x40] sm:$0xff]
    %v181 = vld [vmem:[#allocation7 + $0x48] sm:$0xff]
    %v182 = vld [vmem:[#allocation7 + $0x50] sm:$0xff]
    %v183 = vld [vmem:[#allocation7 + $0x58] sm:$0xff]
    %v184 = vld [vmem:[#allocation7 + $0x60] sm:$0xff]
    %v185 = vld [vmem:[#allocation7 + $0x68] sm:$0xff]
    %v186 = vld [vmem:[#allocation7 + $0x70] sm:$0xff]
    %v187 = vld [vmem:[#allocation7 + $0x78] sm:$0xff]
    %v188 = vld [vmem:[#allocation7 + $0x80] sm:$0xff]
    %v189 = vld [vmem:[#allocation7 + $0x88] sm:$0xff]
    %v190 = vld [vmem:[#allocation7 + $0x90] sm:$0xff]
    %v191 = vld [vmem:[#allocation7 + $0x98] sm:$0xff]
    %v192 = vld [vmem:[#allocation7 + $0xa0] sm:$0xff]
    %v193 = vld [vmem:[#allocation7 + $0xa8] sm:$0xff]
    %v194 = vld [vmem:[#allocation7 + $0xb0] sm:$0xff]
    %v195 = vld [vmem:[#allocation7 + $0xb8] sm:$0xff]
    %v196 = vld [vmem:[#allocation7 + $0xc0] sm:$0xff]
    %v197 = vld [vmem:[#allocation7 + $0xc8] sm:$0xff]
    %v198 = vld [vmem:[#allocation7 + $0xd0] sm:$0xff]
    %v199 = vld [vmem:[#allocation7 + $0xd8] sm:$0xff]
    %v200 = vld [vmem:[#allocation7 + $0xe0] sm:$0xff]
    %v201 = vld [vmem:[#allocation7 + $0xe8] sm:$0xff]
    %v202 = vld [vmem:[#allocation7 + $0xf0] sm:$0xff]
    %v203 = vld [vmem:[#allocation7 + $0xf8] sm:$0xff]
    %v204 = vld [vmem:[%s4] sm:$0x3]
    %v206 = vlaneseq
    %v207 = vshrl.u32 %v206, 7
    %v208 = vsub.s32 0, %v207
    %v209 = vrot.slane %v204, %v208
    %v210 = vlaneseq
    %v211 = vshrl.u32 %v210, 7
    %v212 = vsub.s32 1, %v211
    %v213 = vrot.slane %v204, %v212
    %v248 = vunpack.c.l.b16 %v172
    %v249 = vunpack.c.h.b16 %v172
    %v250 = vunpack.c.l.b16 %v173
    %v251 = vunpack.c.h.b16 %v173
    %v252 = vunpack.c.l.b16 %v174
    %v253 = vunpack.c.h.b16 %v174
    %v254 = vunpack.c.l.b16 %v175
    %v255 = vunpack.c.h.b16 %v175
    %v256 = vunpack.c.l.b16 %v176
    %v257 = vunpack.c.h.b16 %v176
    %v258 = vunpack.c.l.b16 %v177
    %v259 = vunpack.c.h.b16 %v177
    %v260 = vunpack.c.l.b16 %v178
    %v261 = vunpack.c.h.b16 %v178
    %v262 = vunpack.c.l.b16 %v179
    %v263 = vunpack.c.h.b16 %v179
    %v264 = vunpack.c.l.b16 %v180
    %v265 = vunpack.c.h.b16 %v180
    %v266 = vunpack.c.l.b16 %v181
    %v267 = vunpack.c.h.b16 %v181
    %v268 = vunpack.c.l.b16 %v182
    %v269 = vunpack.c.h.b16 %v182
    %v270 = vunpack.c.l.b16 %v183
    %v271 = vunpack.c.h.b16 %v183
    %v272 = vunpack.c.l.b16 %v184
    %v273 = vunpack.c.h.b16 %v184
    %v274 = vunpack.c.l.b16 %v185
    %v275 = vunpack.c.h.b16 %v185
    %v276 = vunpack.c.l.b16 %v186
    %v277 = vunpack.c.h.b16 %v186
    %v278 = vunpack.c.l.b16 %v187
    %v279 = vunpack.c.h.b16 %v187
    %v280 = vunpack.c.l.b16 %v188
    %v281 = vunpack.c.h.b16 %v188
    %v282 = vunpack.c.l.b16 %v189
    %v283 = vunpack.c.h.b16 %v189
    %v284 = vunpack.c.l.b16 %v190
    %v285 = vunpack.c.h.b16 %v190
    %v286 = vunpack.c.l.b16 %v191
    %v287 = vunpack.c.h.b16 %v191
    %v288 = vunpack.c.l.b16 %v192
    %v289 = vunpack.c.h.b16 %v192
    %v290 = vunpack.c.l.b16 %v193
    %v291 = vunpack.c.h.b16 %v193
    %v292 = vunpack.c.l.b16 %v194
    %v293 = vunpack.c.h.b16 %v194
    %v294 = vunpack.c.l.b16 %v195
    %v295 = vunpack.c.h.b16 %v195
    %v296 = vunpack.c.l.b16 %v196
    %v297 = vunpack.c.h.b16 %v196
    %v298 = vunpack.c.l.b16 %v197
    %v299 = vunpack.c.h.b16 %v197
    %v300 = vunpack.c.l.b16 %v198
    %v301 = vunpack.c.h.b16 %v198
    %v302 = vunpack.c.l.b16 %v199
    %v303 = vunpack.c.h.b16 %v199
    %v304 = vunpack.c.l.b16 %v200
    %v305 = vunpack.c.h.b16 %v200
    %v306 = vunpack.c.l.b16 %v201
    %v307 = vunpack.c.h.b16 %v201
    %v308 = vunpack.c.l.b16 %v202
    %v309 = vunpack.c.h.b16 %v202
    %v310 = vunpack.c.l.b16 %v203
    %v311 = vunpack.c.h.b16 %v203
    %v312 = vpack.c.b16 %v250, %v248
    %v313 = vpack.c.b16 %v251, %v249
    %v314 = vpack.c.b16 %v254, %v252
    %v315 = vpack.c.b16 %v255, %v253
    %v316 = vpack.c.b16 %v258, %v256
    %v317 = vpack.c.b16 %v259, %v257
    %v318 = vpack.c.b16 %v262, %v260
    %v319 = vpack.c.b16 %v263, %v261
    %v320 = vpack.c.b16 %v266, %v264
    %v321 = vpack.c.b16 %v267, %v265
    %v322 = vpack.c.b16 %v270, %v268
    %v323 = vpack.c.b16 %v271, %v269
    %v324 = vpack.c.b16 %v274, %v272
    %v325 = vpack.c.b16 %v275, %v273
    %v326 = vpack.c.b16 %v278, %v276
    %v327 = vpack.c.b16 %v279, %v277
    %v328 = vpack.c.b16 %v282, %v280
    %v329 = vpack.c.b16 %v283, %v281
    %v330 = vpack.c.b16 %v286, %v284
    %v331 = vpack.c.b16 %v287, %v285
    %v332 = vpack.c.b16 %v290, %v288
    %v333 = vpack.c.b16 %v291, %v289
    %v334 = vpack.c.b16 %v294, %v292
    %v335 = vpack.c.b16 %v295, %v293
    %v336 = vpack.c.b16 %v298, %v296
    %v337 = vpack.c.b16 %v299, %v297
    %v338 = vpack.c.b16 %v302, %v300
    %v339 = vpack.c.b16 %v303, %v301
    %v340 = vpack.c.b16 %v306, %v304
    %v341 = vpack.c.b16 %v307, %v305
    %v342 = vpack.c.b16 %v310, %v308
    %v343 = vpack.c.b16 %v311, %v309
    %376 = vmatprep.subr.bf16.mxu0 %v313
    %377 = vmatpush1.bf16.msra.mxu0 %v312
    %378 = vmatprep.subr.bf16.mxu0 %v315
    %379 = vmatpush1.bf16.msra.mxu0 %v314
    %380 = vmatprep.subr.bf16.mxu0 %v317
    %381 = vmatpush1.bf16.msra.mxu0 %v316
    %382 = vmatprep.subr.bf16.mxu0 %v319
    %383 = vmatpush1.bf16.msra.mxu0 %v318
    %384 = vmatprep.subr.bf16.mxu0 %v321
    %385 = vmatpush1.bf16.msra.mxu0 %v320
    %386 = vmatprep.subr.bf16.mxu0 %v323
    %387 = vmatpush1.bf16.msra.mxu0 %v322
    %388 = vmatprep.subr.bf16.mxu0 %v325
    %389 = vmatpush1.bf16.msra.mxu0 %v324
    %390 = vmatprep.subr.bf16.mxu0 %v327
    %391 = vmatpush1.bf16.msra.mxu0 %v326
    %392 = vmatprep.subr.bf16.mxu0 %v329
    %393 = vmatpush1.bf16.msra.mxu0 %v328
    %394 = vmatprep.subr.bf16.mxu0 %v331
    %395 = vmatpush1.bf16.msra.mxu0 %v330
    %396 = vmatprep.subr.bf16.mxu0 %v333
    %397 = vmatpush1.bf16.msra.mxu0 %v332
    %398 = vmatprep.subr.bf16.mxu0 %v335
    %399 = vmatpush1.bf16.msra.mxu0 %v334
    %400 = vmatprep.subr.bf16.mxu0 %v337
    %401 = vmatpush1.bf16.msra.mxu0 %v336
    %402 = vmatprep.subr.bf16.mxu0 %v339
    %403 = vmatpush1.bf16.msra.mxu0 %v338
    %404 = vmatprep.subr.bf16.mxu0 %v341
    %405 = vmatpush1.bf16.msra.mxu0 %v340
    %406 = vmatprep.subr.bf16.mxu0 %v343
    %407 = vmatpush1.bf16.msra.mxu0 %v342
    %408 = vmatprep.mubr.bf16.mxu0 %v171
    %409 = vmatmul.mubr.bf16.gmra.mrb[0].mxu0 %v170
    %v410 = vpop.f32.mrb[0].mxu0
    %v411 = vadd.f32 %v209, %v410
    %v412 = vpop.f32.mrb[0].mxu0
    %v413 = vadd.f32 %v213, %v412
    %v414 = vpop.f32.mrb[0].mxu0
    %v415 = vadd.f32 %v209, %v414
    %v416 = vpop.f32.mrb[0].mxu0
    %v417 = vadd.f32 %v213, %v416
    %418 = vdwg.mxu0
    %v419 = vmax.f32 %v411, 0.0
    %v420 = vmax.f32 %v413, 0.0
    %v421 = vmax.f32 %v415, 0.0
    %v422 = vmax.f32 %v417, 0.0
    %v423 = vpack.c.bf16 %v421, %v419
    %v424 = vpack.c.bf16 %v422, %v420
    %v425 = vld [vmem:[#allocation8] sm:$0xf]
    %v426 = vld [vmem:[#allocation8 + $0x4] sm:$0xf]
    %v427 = vld [vmem:[#allocation8 + $0x8] sm:$0xf]
    %v428 = vld [vmem:[#allocation8 + $0xc] sm:$0xf]
    %v429 = vld [vmem:[#allocation8 + $0x10] sm:$0xf]
    %v430 = vld [vmem:[#allocation8 + $0x14] sm:$0xf]
    %v431 = vld [vmem:[#allocation8 + $0x18] sm:$0xf]
    %v432 = vld [vmem:[#allocation8 + $0x1c] sm:$0xf]
    %v433 = vld [vmem:[#allocation8 + $0x20] sm:$0xf]
    %v434 = vld [vmem:[#allocation8 + $0x24] sm:$0xf]
    %v435 = vld [vmem:[#allocation8 + $0x28] sm:$0xf]
    %v436 = vld [vmem:[#allocation8 + $0x2c] sm:$0xf]
    %v437 = vld [vmem:[#allocation8 + $0x30] sm:$0xf]
    %v438 = vld [vmem:[#allocation8 + $0x34] sm:$0xf]
    %v439 = vld [vmem:[#allocation8 + $0x38] sm:$0xf]
    %v440 = vld [vmem:[#allocation8 + $0x3c] sm:$0xf]
    %v441 = vld [vmem:[#allocation8 + $0x40] sm:$0xf]
    %v442 = vld [vmem:[#allocation8 + $0x44] sm:$0xf]
    %v443 = vld [vmem:[#allocation8 + $0x48] sm:$0xf]
    %v444 = vld [vmem:[#allocation8 + $0x4c] sm:$0xf]
    %v445 = vld [vmem:[#allocation8 + $0x50] sm:$0xf]
    %v446 = vld [vmem:[#allocation8 + $0x54] sm:$0xf]
    %v447 = vld [vmem:[#allocation8 + $0x58] sm:$0xf]
    %v448 = vld [vmem:[#allocation8 + $0x5c] sm:$0xf]
    %v449 = vld [vmem:[#allocation8 + $0x60] sm:$0xf]
    %v450 = vld [vmem:[#allocation8 + $0x64] sm:$0xf]
    %v451 = vld [vmem:[#allocation8 + $0x68] sm:$0xf]
    %v452 = vld [vmem:[#allocation8 + $0x6c] sm:$0xf]
    %v453 = vld [vmem:[#allocation8 + $0x70] sm:$0xf]
    %v454 = vld [vmem:[#allocation8 + $0x74] sm:$0xf]
    %v455 = vld [vmem:[#allocation8 + $0x78] sm:$0xf]
    %v456 = vld [vmem:[#allocation8 + $0x7c] sm:$0xf]
    %v457 = vld [vmem:[#allocation8 + $0x80] sm:$0xf]
    %v458 = vld [vmem:[#allocation8 + $0x84] sm:$0x3]
    %v459 = vld [vmem:[%s6] sm:$0x1]
    %v461 = vlaneseq
    %v462 = vshrl.u32 %v461, 7
    %v463 = vsub.s32 0, %v462
    %v464 = vrot.slane %v459, %v463
    %v500 = vunpack.c.l.b16 %v425
    %v501 = vunpack.c.l.b16 %v426
    %v502 = vunpack.c.l.b16 %v427
    %v503 = vunpack.c.l.b16 %v428
    %v504 = vunpack.c.l.b16 %v429
    %v505 = vunpack.c.l.b16 %v430
    %v506 = vunpack.c.l.b16 %v431
    %v507 = vunpack.c.l.b16 %v432
    %v508 = vunpack.c.l.b16 %v433
    %v509 = vunpack.c.l.b16 %v434
    %v510 = vunpack.c.l.b16 %v435
    %v511 = vunpack.c.l.b16 %v436
    %v512 = vunpack.c.l.b16 %v437
    %v513 = vunpack.c.l.b16 %v438
    %v514 = vunpack.c.l.b16 %v439
    %v515 = vunpack.c.l.b16 %v440
    %v516 = vunpack.c.l.b16 %v441
    %v517 = vunpack.c.l.b16 %v442
    %v518 = vunpack.c.l.b16 %v443
    %v519 = vunpack.c.l.b16 %v444
    %v520 = vunpack.c.l.b16 %v445
    %v521 = vunpack.c.l.b16 %v446
    %v522 = vunpack.c.l.b16 %v447
    %v523 = vunpack.c.l.b16 %v448
    %v524 = vunpack.c.l.b16 %v449
    %v525 = vunpack.c.l.b16 %v450
    %v526 = vunpack.c.l.b16 %v451
    %v527 = vunpack.c.l.b16 %v452
    %v528 = vunpack.c.l.b16 %v453
    %v529 = vunpack.c.l.b16 %v454
    %v530 = vunpack.c.l.b16 %v455
    %v531 = vunpack.c.l.b16 %v456
    %v532 = vunpack.c.l.b16 %v457
    %v533 = vunpack.c.l.b16 %v458
    %v534 = vpack.c.b16 %v501, %v500
    %v535 = vpack.c.b16 %v503, %v502
    %v536 = vpack.c.b16 %v505, %v504
    %v537 = vpack.c.b16 %v507, %v506
    %v538 = vpack.c.b16 %v509, %v508
    %v539 = vpack.c.b16 %v511, %v510
    %v540 = vpack.c.b16 %v513, %v512
    %v541 = vpack.c.b16 %v515, %v514
    %v542 = vpack.c.b16 %v517, %v516
    %v543 = vpack.c.b16 %v519, %v518
    %v544 = vpack.c.b16 %v521, %v520
    %v545 = vpack.c.b16 %v523, %v522
    %v546 = vpack.c.b16 %v525, %v524
    %v547 = vpack.c.b16 %v527, %v526
    %v548 = vpack.c.b16 %v529, %v528
    %v549 = vpack.c.b16 %v531, %v530
    %v550 = vpack.c.b16 %v533, %v532
    %v568 = vsel %vm116, %v550, 0
    %570 = vmatprep.subr.bf16.mxu0 0
    %571 = vmatpush1.bf16.msra.mxu0 %v534
    %572 = vmatprep.subr.bf16.mxu0 0
    %573 = vmatpush1.bf16.msra.mxu0 %v535
    %574 = vmatprep.subr.bf16.mxu0 0
    %575 = vmatpush1.bf16.msra.mxu0 %v536
    %576 = vmatprep.subr.bf16.mxu0 0
    %577 = vmatpush1.bf16.msra.mxu0 %v537
    %578 = vmatprep.subr.bf16.mxu0 0
    %579 = vmatpush1.bf16.msra.mxu0 %v538
    %580 = vmatprep.subr.bf16.mxu0 0
    %581 = vmatpush1.bf16.msra.mxu0 %v539
    %582 = vmatprep.subr.bf16.mxu0 0
    %583 = vmatpush1.bf16.msra.mxu0 %v540
    %584 = vmatprep.subr.bf16.mxu0 0
    %585 = vmatpush1.bf16.msra.mxu0 %v541
    %586 = vmatprep.subr.bf16.mxu0 0
    %587 = vmatpush1.bf16.msra.mxu0 %v542
    %588 = vmatprep.subr.bf16.mxu0 0
    %589 = vmatpush1.bf16.msra.mxu0 %v543
    %590 = vmatprep.subr.bf16.mxu0 0
    %591 = vmatpush1.bf16.msra.mxu0 %v544
    %592 = vmatprep.subr.bf16.mxu0 0
    %593 = vmatpush1.bf16.msra.mxu0 %v545
    %594 = vmatprep.subr.bf16.mxu0 0
    %595 = vmatpush1.bf16.msra.mxu0 %v546
    %596 = vmatprep.subr.bf16.mxu0 0
    %597 = vmatpush1.bf16.msra.mxu0 %v547
    %598 = vmatprep.subr.bf16.mxu0 0
    %599 = vmatpush1.bf16.msra.mxu0 %v548
    %600 = vmatprep.subr.bf16.mxu0 0
    %601 = vmatpush1.bf16.msra.mxu0 %v549
    %602 = vmatprep.mubr.bf16.mxu0 %v424
    %603 = vmatmul.mubr.bf16.gmra.mrb[0].mxu0 %v423
    %v604 = vpop.f32.mrb[0].mxu0
    %v605 = vadd.f32 %v464, %v604
    %v606 = vpop.f32.mrb[0].mxu0
    %v607 = vpop.f32.mrb[0].mxu0
    %v608 = vadd.f32 %v464, %v607
    %v609 = vpop.f32.mrb[0].mxu0
    %610 = vdwg.mxu0
    %611 = vmatprep.subr.bf16.mxu0 0
    %612 = vmatpush1.bf16.msra.mxu0 %v568
    %613 = vmatprep.subr.bf16.mxu0 0
    %614 = vmatpush1.bf16.msra.mxu0 0
    %615 = vmatprep.subr.bf16.mxu0 0
    %616 = vmatpush1.bf16.msra.mxu0 0
    %617 = vmatprep.subr.bf16.mxu0 0
    %618 = vmatpush1.bf16.msra.mxu0 0
    %619 = vmatprep.subr.bf16.mxu0 0
    %620 = vmatpush1.bf16.msra.mxu0 0
    %621 = vmatprep.subr.bf16.mxu0 0
    %622 = vmatpush1.bf16.msra.mxu0 0
    %623 = vmatprep.subr.bf16.mxu0 0
    %624 = vmatpush1.bf16.msra.mxu0 0
    %625 = vmatprep.subr.bf16.mxu0 0
    %626 = vmatpush1.bf16.msra.mxu0 0
    %627 = vmatprep.subr.bf16.mxu0 0
    %628 = vmatpush1.bf16.msra.mxu0 0
    %629 = vmatprep.subr.bf16.mxu0 0
    %630 = vmatpush1.bf16.msra.mxu0 0
    %631 = vmatprep.subr.bf16.mxu0 0
    %632 = vmatpush1.bf16.msra.mxu0 0
    %633 = vmatprep.subr.bf16.mxu0 0
    %634 = vmatpush1.bf16.msra.mxu0 0
    %635 = vmatprep.subr.bf16.mxu0 0
    %636 = vmatpush1.bf16.msra.mxu0 0
    %637 = vmatprep.subr.bf16.mxu0 0
    %638 = vmatpush1.bf16.msra.mxu0 0
    %639 = vmatprep.subr.bf16.mxu0 0
    %640 = vmatpush1.bf16.msra.mxu0 0
    %641 = vmatprep.subr.bf16.mxu0 0
    %642 = vmatpush1.bf16.msra.mxu0 0
    %643 = vmatprep.mubr.bf16.mxu0 0
    %644 = vmatmul.mubr.bf16.gmra.mrb[0].mxu0 %v114
    %v645 = vpop.f32.mrb[0].mxu0
    %v646 = vadd.f32 %v605, %v645
    %v647 = vpop.f32.mrb[0].mxu0
    %v648 = vpop.f32.mrb[0].mxu0
    %v649 = vadd.f32 %v608, %v648
    %v650 = vpop.f32.mrb[0].mxu0
    %651 = vdwg.mxu0
    %652 = vst [vmem:[#allocation10] sm:$0xff] %v646
    %653 = vst [vmem:[#allocation10 + $0x8] sm:$0xff] %v649
    // Predicated region
    $region46: #{tpu_custom_call.1} parent=1 // pred_check
      _
    $region47: #{tpu_custom_call.1} parent=1 // pred_check_branch
      %655 = sbr.rel (0) target = $region49
    $region48: #{tpu_custom_call.1} parent=1 // pred_region
      %s657 = ssub.s32 256, 256
      %658 = vsyncadd [#allocation4], %s657
      %s659 = sshll.u32 [#allocation10], 4
      %s660 = int_to_ptr.vmem [resolvable:$true] %s659
      %665 = dma.vmem_to_hbm [thread:$0]  %s660, 256, %s7, [#allocation4], 128, 128, 8
    $region49: #{tpu_custom_call.1} parent=1 // pred_fallthru
      _
    // Predicated region
    $region50: #{tpu_custom_call.1} parent=1 // pred_check
      _
    $region51: #{tpu_custom_call.1} parent=1 // pred_check_branch
      %667 = sbr.rel (0) target = $region53
    $region52: #{tpu_custom_call.1} parent=1 // pred_region
      %668 = dma.done [#allocation4], 256
    $region53: #{tpu_custom_call.1} parent=1 // pred_fallthru
      _
    %669 = vsyncpa [#allocation3], 1
    %670 = vsyncpa [#allocation6], 1
    %671 = vsyncpa [#allocation9], 1
    %672 = vsyncpa [#allocation4], 1

</llo_original>
